<compile_context>
chip_gen: v7x
topology: tpu7x:2x2x1
jax: 0.10.0
libtpu: 0.0.40
codegen_flags: <defaults>
</compile_context>

<pallas_src>
import jax
import jax.numpy as jnp
from jax import lax
from jax.experimental import pallas as pl
from jax.experimental.pallas import tpu as pltpu

# ---- "config" the PyTorch module would read from cdpp_env.PROJECT_CFG['cost_model'] ----
EMBED_FEATURE_LEN = 32
REGRESSION_LAYERS = [64, 64]
DROPOUT_RATE = None          # -> self.dropout is None
IS_CROSS_DEVICE = 'add'      # -> regression input dim = 1 * embed_feature_len

_TRANS_B_DIMS = (((1,), (1,)), ((), ()))   # contract the last dim of both operands


def decoder_kernel(x_ref, w1_ref, b1_ref, w2_ref, b2_ref, wo_ref, bo_ref, out_ref):
    """One batch tile; the batch lives on the lane axis throughout.

    x_ref : (TILE, F)  f32   (natural row-major block of the (N, F) input)
    w1_ref: (H1, F)   bf16   b1_ref: (H1, 1) f32
    w2_ref: (H2, H1)  bf16   b2_ref: (H2, 1) f32
    wo_ref: (H2, 1)   f32    bo_ref: (1, 1)  f32
    out_ref: (1, TILE) f32   (lane-dense output)
    """
    xb = x_ref[...].astype(jnp.bfloat16)                         # in-kernel cast (VPU)

    # regression layer 1: w1 . x^T on the MXU (bf16 in, f32 accumulate), batch on lanes.
    h = lax.dot_general(w1_ref[...], xb, _TRANS_B_DIMS,
                        preferred_element_type=jnp.float32)       # (H1, TILE)
    # bias + ReLU fused with the bf16 downcast: hidden materialized once, in bf16.
    h = jnp.maximum(h + b1_ref[...], 0.0).astype(jnp.bfloat16)

    # regression layer 2: Linear + ReLU (standard orientation, f32 accumulate).
    h2 = jnp.dot(w2_ref[...], h, preferred_element_type=jnp.float32) + b2_ref[...]
    h2 = jnp.maximum(h2, 0.0)                                     # (H2, TILE) f32

    # output layer (H2 -> 1, no activation/bn): VPU multiply + sublane reduce, all f32.
    p = jnp.sum(h2 * wo_ref[...], axis=0, keepdims=True) + bo_ref[...]

    out_ref[...] = jnp.nan_to_num(p).astype(out_ref.dtype)        # torch.nan_to_num


def _choose_tile(n, tile_n):
    """Clamp the batch tile; keep >=2 grid steps (v7x 2-TensorCore sharding) when cheap."""
    if n <= tile_n:
        if n >= 256 and n % 256 == 0:
            return n // 2          # two 128-aligned blocks -> both TensorCores can work
        return n                   # single block covering the whole (possibly ragged) batch
    return tile_n


def decoder_forward(x, params, *, tile_n=8192):
    """x: (N, F) f32 in natural layout (never transposed/padded in HBM).
    params in torch-native layout: W (out_features, in_features), b (out_features,).
    Returns (N, 1) f32 predictions."""
    w1, b1, w2, b2, wo, bo = params
    N, F = x.shape
    H1 = w1.shape[0]
    H2 = w2.shape[0]

    tile = _choose_tile(N, tile_n)
    if tile < N:
        assert tile % 128 == 0, "sub-batch tiles must be lane-aligned (multiple of 128)"
    grid = (pl.cdiv(N, tile),)

    # Tiny one-time weight prep (bf16 MXU operands, column-vector biases); x stays untouched.
    w1b = w1.astype(jnp.bfloat16)
    w2b = w2.astype(jnp.bfloat16)
    b1c = b1.reshape(H1, 1).astype(jnp.float32)
    b2c = b2.reshape(H2, 1).astype(jnp.float32)
    wo_c = wo.reshape(H2, 1).astype(jnp.float32)
    bo_c = bo.reshape(1, 1).astype(jnp.float32)

    # Constant block index -> DMA'd once, VMEM-resident across the whole grid.
    # TODO(synk): could be single-buffered (pl.Buffered(1)) to shave the duplicate buffer.
    resident = lambda shape: pl.BlockSpec(shape, lambda i: (0, 0))

    flops = 2 * N * (F * H1 + H1 * H2 + H2)
    bytes_accessed = (x.size * 4 + N * 4
                      + (w1b.size + w2b.size) * 2
                      + (b1c.size + b2c.size + wo_c.size + bo_c.size) * 4)

    out = pl.pallas_call(
        decoder_kernel,
        out_shape=jax.ShapeDtypeStruct((1, N), jnp.float32),
        grid=grid,
        in_specs=[
            pl.BlockSpec((tile, F), lambda i: (i, 0)),   # x: streamed & auto double-buffered
            resident((H1, F)), resident((H1, 1)),
            resident((H2, H1)), resident((H2, 1)),
            resident((H2, 1)), resident((1, 1)),
        ],
        out_specs=pl.BlockSpec((1, tile), lambda i: (0, i)),
        compiler_params=pltpu.CompilerParams(
            dimension_semantics=("parallel",),
            vmem_limit_bytes=64 * 1024 * 1024),
        cost_estimate=pl.CostEstimate(flops=flops, transcendentals=0,
                                      bytes_accessed=bytes_accessed),
    )(x.astype(jnp.float32), w1b, b1c, w2b, b2c, wo_c, bo_c)

    # (1, N) lane-dense result -> (N, 1) predictions; same linear order, so this is a bitcast.
    return out.reshape(N, 1)


def init_params(key, in_dim, layers):
    """Deterministic init mimicking torch.nn.Linear default (uniform +-1/sqrt(fan_in)).
    Torch-native layout: weights (out_features, in_features); biases (out_features,)."""
    dims = [in_dim] + list(layers) + [1]   # trailing 1 = output layer
    params = []
    for i in range(len(dims) - 1):
        key, kw, kb = jax.random.split(key, 3)
        fan_in, fan_out = dims[i], dims[i + 1]
        bound = 1.0 / (fan_in ** 0.5)
        w = jax.random.uniform(kw, (fan_out, fan_in), jnp.float32, -bound, bound)
        b = jax.random.uniform(kb, (fan_out,), jnp.float32, -bound, bound)
        params += [w, b]
    return tuple(params)


def reference_forward(x, params):
    """Pure-JAX reference with the same numerics as the kernel (bf16 MXU inputs, f32 accum).
    Note: ~1e-3 relative error vs the pure-f32 PyTorch path is expected from the bf16 cast."""
    w1, b1, w2, b2, wo, bo = params
    xb = x.astype(jnp.bfloat16)
    h = jnp.dot(xb, w1.astype(jnp.bfloat16).T, preferred_element_type=jnp.float32) + b1
    h = jnp.maximum(h, 0.0).astype(jnp.bfloat16)
    h = jnp.dot(h, w2.astype(jnp.bfloat16).T, preferred_element_type=jnp.float32) + b2
    h = jnp.maximum(h, 0.0)
    p = jnp.dot(h, wo.T.astype(jnp.float32)) + bo
    return jnp.nan_to_num(p)


if __name__ == "__main__":
    key = jax.random.PRNGKey(0)
    key, kx1, kx2, kx3 = jax.random.split(key, 4)

    # regression input dim = 1 * embed_feature_len  (is_cross_device='add')
    in_dim = 1 * EMBED_FEATURE_LEN
    params = init_params(key, in_dim, REGRESSION_LAYERS)

    # Small-shape check (spec shapes): batch=8, features=32 -> single (ragged) block.
    x_small = jax.random.normal(kx1, (8, in_dim), jnp.float32)
    preds = jax.block_until_ready(decoder_forward(x_small, params))
    ref = reference_forward(x_small, params)
    assert preds.shape == (8, 1)
    assert jnp.allclose(preds, ref, atol=5e-3, rtol=5e-3), "mismatch vs reference (small)"

    # Multi-tile + ragged tail: N=300, tile=128 -> grid of 3, last block clipped by Pallas.
    x_big = jax.random.normal(kx2, (300, in_dim), jnp.float32)
    preds2 = jax.block_until_ready(decoder_forward(x_big, params, tile_n=128))
    ref2 = reference_forward(x_big, params)
    assert preds2.shape == (300, 1)
    assert jnp.allclose(preds2, ref2, atol=5e-3, rtol=5e-3), "mismatch vs reference (tiled)"

    # Megacore-split path: N=512 with the default tile -> two 256-wide blocks, grid of 2.
    x_mid = jax.random.normal(kx3, (512, in_dim), jnp.float32)
    preds3 = jax.block_until_ready(decoder_forward(x_mid, params))
    ref3 = reference_forward(x_mid, params)
    assert preds3.shape == (512, 1)
    assert jnp.allclose(preds3, ref3, atol=5e-3, rtol=5e-3), "mismatch vs reference (split)"

    print("KERNEL_OK")
</pallas_src>

<mosaic_0001>
module attributes {stable_mosaic.version = 11 : i64} {
  func.func @decoder_kernel(%arg0: i32, %arg1: memref<8x32xf32, #tpu.memory_space<vmem>>, %arg2: memref<64x32xbf16, #tpu.memory_space<vmem>>, %arg3: memref<64x1xf32, #tpu.memory_space<vmem>>, %arg4: memref<64x64xbf16, #tpu.memory_space<vmem>>, %arg5: memref<64x1xf32, #tpu.memory_space<vmem>>, %arg6: memref<64x1xf32, #tpu.memory_space<vmem>>, %arg7: memref<1x1xf32, #tpu.memory_space<vmem>>, %arg8: memref<1x8xf32, #tpu.memory_space<vmem>>) attributes {dimension_semantics = [#tpu.dimension_semantics<parallel>], iteration_bounds = array<i64: 1>, scalar_prefetch = 0 : i64, scratch_operands = 0 : i64, tpu.core_type = #tpu.core_type<tc>, window_params = [{transform_indices = @transform_0, window_bounds = array<i64: 8, 32>}, {pipeline_mode = #tpu.pipeline_mode<synchronous>, transform_indices = @transform_1, window_bounds = array<i64: 64, 32>}, {pipeline_mode = #tpu.pipeline_mode<synchronous>, transform_indices = @transform_2, window_bounds = array<i64: 64, 1>}, {pipeline_mode = #tpu.pipeline_mode<synchronous>, transform_indices = @transform_3, window_bounds = array<i64: 64, 64>}, {pipeline_mode = #tpu.pipeline_mode<synchronous>, transform_indices = @transform_4, window_bounds = array<i64: 64, 1>}, {pipeline_mode = #tpu.pipeline_mode<synchronous>, transform_indices = @transform_5, window_bounds = array<i64: 64, 1>}, {pipeline_mode = #tpu.pipeline_mode<synchronous>, transform_indices = @transform_6, window_bounds = array<i64: 1, 1>}, {transform_indices = @transform_7, window_bounds = array<i64: 1, 8>}]} {
    %c0 = arith.constant 0 : index
    %c0_0 = arith.constant 0 : index
    %0 = vector.load %arg1[%c0, %c0_0] : memref<8x32xf32, #tpu.memory_space<vmem>>, vector<8x32xf32>
    %1 = arith.truncf %0 : vector<8x32xf32> to vector<8x32xbf16>
    %c0_1 = arith.constant 0 : index
    %c0_2 = arith.constant 0 : index
    %2 = vector.load %arg2[%c0_1, %c0_2] : memref<64x32xbf16, #tpu.memory_space<vmem>>, vector<64x32xbf16>
    %cst = arith.constant dense<0.000000e+00> : vector<64x8xf32>
    %3 = tpu.matmul %2, %1, %cst {dimension_numbers = #tpu.dot_dimension_numbers<[1], [1], [0], [0], [0, 0, 1, 0], [], []>} : vector<64x32xbf16>, vector<8x32xbf16>, vector<64x8xf32> -> vector<64x8xf32>
    %c0_3 = arith.constant 0 : index
    %c0_4 = arith.constant 0 : index
    %4 = vector.load %arg3[%c0_3, %c0_4] : memref<64x1xf32, #tpu.memory_space<vmem>>, vector<64x1xf32>
    %5 = vector.broadcast %4 : vector<64x1xf32> to vector<64x8xf32>
    %6 = arith.addf %3, %5 : vector<64x8xf32>
    %cst_5 = arith.constant 0.000000e+00 : f32
    %7 = vector.broadcast %cst_5 : f32 to vector<64x8xf32>
    %8 = arith.maximumf %6, %7 : vector<64x8xf32>
    %9 = arith.truncf %8 : vector<64x8xf32> to vector<64x8xbf16>
    %c0_6 = arith.constant 0 : index
    %c0_7 = arith.constant 0 : index
    %10 = vector.load %arg4[%c0_6, %c0_7] : memref<64x64xbf16, #tpu.memory_space<vmem>>, vector<64x64xbf16>
    %cst_8 = arith.constant dense<0.000000e+00> : vector<64x8xf32>
    %11 = tpu.matmul %10, %9, %cst_8 {dimension_numbers = #tpu.dot_dimension_numbers<[1], [0], [0], [1], [0, 0, 1, 1], [], []>} : vector<64x64xbf16>, vector<64x8xbf16>, vector<64x8xf32> -> vector<64x8xf32>
    %c0_9 = arith.constant 0 : index
    %c0_10 = arith.constant 0 : index
    %12 = vector.load %arg5[%c0_9, %c0_10] : memref<64x1xf32, #tpu.memory_space<vmem>>, vector<64x1xf32>
    %13 = vector.broadcast %12 : vector<64x1xf32> to vector<64x8xf32>
    %14 = arith.addf %11, %13 : vector<64x8xf32>
    %cst_11 = arith.constant 0.000000e+00 : f32
    %15 = vector.broadcast %cst_11 : f32 to vector<64x8xf32>
    %16 = arith.maximumf %14, %15 : vector<64x8xf32>
    %c0_12 = arith.constant 0 : index
    %c0_13 = arith.constant 0 : index
    %17 = vector.load %arg6[%c0_12, %c0_13] : memref<64x1xf32, #tpu.memory_space<vmem>>, vector<64x1xf32>
    %18 = vector.broadcast %17 : vector<64x1xf32> to vector<64x8xf32>
    %19 = arith.mulf %16, %18 : vector<64x8xf32>
    %cst_14 = arith.constant dense<0.000000e+00> : vector<8xf32>
    %20 = vector.multi_reduction <add>, %19, %cst_14 [0] : vector<64x8xf32> to vector<8xf32>
    %21 = vector.shape_cast %20 : vector<8xf32> to vector<1x8xf32>
    %c0_15 = arith.constant 0 : index
    %c0_16 = arith.constant 0 : index
    %22 = vector.load %arg7[%c0_15, %c0_16] : memref<1x1xf32, #tpu.memory_space<vmem>>, vector<1x1xf32>
    %23 = vector.broadcast %22 : vector<1x1xf32> to vector<1x8xf32>
    %24 = arith.addf %21, %23 : vector<1x8xf32>
    %25 = arith.cmpf one, %24, %24 : vector<1x8xf32>
    %cst_17 = arith.constant 0.000000e+00 : f32
    %26 = vector.broadcast %cst_17 : f32 to vector<1x8xf32>
    %27 = arith.select %25, %26, %24 : vector<1x8xi1>, vector<1x8xf32>
    %cst_18 = arith.constant 0x7F800000 : f32
    %28 = vector.broadcast %cst_18 : f32 to vector<1x8xf32>
    %29 = arith.cmpf oeq, %27, %28 : vector<1x8xf32>
    %cst_19 = arith.constant 3.40282347E+38 : f32
    %30 = vector.broadcast %cst_19 : f32 to vector<1x8xf32>
    %31 = arith.select %29, %30, %27 : vector<1x8xi1>, vector<1x8xf32>
    %cst_20 = arith.constant 0xFF800000 : f32
    %32 = vector.broadcast %cst_20 : f32 to vector<1x8xf32>
    %33 = arith.cmpf oeq, %31, %32 : vector<1x8xf32>
    %cst_21 = arith.constant -3.40282347E+38 : f32
    %34 = vector.broadcast %cst_21 : f32 to vector<1x8xf32>
    %35 = arith.select %33, %34, %31 : vector<1x8xi1>, vector<1x8xf32>
    %c0_22 = arith.constant 0 : index
    %c0_23 = arith.constant 0 : index
    %36 = vector.load %arg8[%c0_22, %c0_23] : memref<1x8xf32, #tpu.memory_space<vmem>>, vector<1x8xf32>
    tpu.vector_store %arg8[%c0_22, %c0_23], %35 {strides = array<i32>} : memref<1x8xf32, #tpu.memory_space<vmem>>, vector<1x8xf32>,
    return
  }
  func.func @transform_0(%arg0: i32) -> (i32, i32) {
    %c0_i32 = arith.constant 0 : i32
    %c0_i32_0 = arith.constant 0 : i32
    return %arg0, %c0_i32 : i32, i32
  }
  func.func @transform_1(%arg0: i32) -> (i32, i32) {
    %c0_i32 = arith.constant 0 : i32
    %c0_i32_0 = arith.constant 0 : i32
    %c0_i32_1 = arith.constant 0 : i32
    return %c0_i32, %c0_i32_0 : i32, i32
  }
  func.func @transform_2(%arg0: i32) -> (i32, i32) {
    %c0_i32 = arith.constant 0 : i32
    %c0_i32_0 = arith.constant 0 : i32
    %c0_i32_1 = arith.constant 0 : i32
    return %c0_i32, %c0_i32_0 : i32, i32
  }
  func.func @transform_3(%arg0: i32) -> (i32, i32) {
    %c0_i32 = arith.constant 0 : i32
    %c0_i32_0 = arith.constant 0 : i32
    %c0_i32_1 = arith.constant 0 : i32
    return %c0_i32, %c0_i32_0 : i32, i32
  }
  func.func @transform_4(%arg0: i32) -> (i32, i32) {
    %c0_i32 = arith.constant 0 : i32
    %c0_i32_0 = arith.constant 0 : i32
    %c0_i32_1 = arith.constant 0 : i32
    return %c0_i32, %c0_i32_0 : i32, i32
  }
  func.func @transform_5(%arg0: i32) -> (i32, i32) {
    %c0_i32 = arith.constant 0 : i32
    %c0_i32_0 = arith.constant 0 : i32
    %c0_i32_1 = arith.constant 0 : i32
    return %c0_i32, %c0_i32_0 : i32, i32
  }
  func.func @transform_6(%arg0: i32) -> (i32, i32) {
    %c0_i32 = arith.constant 0 : i32
    %c0_i32_0 = arith.constant 0 : i32
    %c0_i32_1 = arith.constant 0 : i32
    return %c0_i32, %c0_i32_0 : i32, i32
  }
  func.func @transform_7(%arg0: i32) -> (i32, i32) {
    %c0_i32 = arith.constant 0 : i32
    %c0_i32_0 = arith.constant 0 : i32
    return %c0_i32, %arg0 : i32, i32
  }
}

</mosaic_0001>

<llo_original>
// kernel: tpu_custom_call.1
$region0: #{tpu_custom_call.1}
  #allocation0 [shape = 'u32[]', space=smem, size = 0x4, offset = 0x4, fixed_abs, tag = 'smem constant byte address 0x4 - core index']
  #allocation1 [shape = 'u32[144,128]{1,0:T(1,128)}', space=vmem, size = 0x12000, scoped, tag = 'internal scratch']
  #allocation2 [shape = 'f32[1,1]{1,0:T(1,128)S(1)}', space=vmem, size = 0x200, scoped, tag = 'scoped memory for tpu_custom_call.1']
  %s0 = inlined_call_operand.hbm [shape: f32[8,32], index: 0, kind: input, shape index: {}]
  %s1 = inlined_call_operand.hbm [shape: bf16[64,32], index: 1, kind: input, shape index: {}]
  %s2 = inlined_call_operand.hbm [shape: f32[64,1], index: 2, kind: input, shape index: {}]
  %s3 = inlined_call_operand.hbm [shape: bf16[64,64], index: 3, kind: input, shape index: {}]
  %s4 = inlined_call_operand.hbm [shape: f32[64,1], index: 4, kind: input, shape index: {}]
  %s5 = inlined_call_operand.hbm [shape: f32[64,1], index: 5, kind: input, shape index: {}]
  %s6 = inlined_call_operand.<no memory space> [shape: f32[1,1], index: 6, kind: input, shape index: {}]
  %s7 = inlined_call_operand.hbm [shape: f32[1,8], index: 7, kind: output, shape index: {}]
  %s8 = sld [smem:[#allocation0]]
  $region62: #{tpu_custom_call.1} parent=0
    _
  %s10 = ssub.s32 1, %s8
  %s11 = scalar_select 0, %s10, %s8
  %v12 = vstv %s6
  %13 = vst [vmem:[#allocation2] sm:$0x1] %v12
  $region1: #{tpu_custom_call.1} parent=0
    #allocation3 [shape = 'u8[4096]{0}', space=vmem, size = 0x1000, scoped, tag = 'input window, operand 0, single buffered']
    #allocation4 [shape = 's32[1]{0}', space=sflag, size = 0x4, scoped, tag = 'scoped memory for tpu_custom_call.1']
    #allocation5 [shape = 's32[1]{0}', space=sflag, size = 0x4, scoped, tag = 'scoped memory for tpu_custom_call.1']
    #allocation6 [shape = 'u8[16384]{0}', space=vmem, size = 0x4000, scoped, tag = 'input window, operand 1, single buffered']
    #allocation7 [shape = 's32[1]{0}', space=sflag, size = 0x4, scoped, tag = 'scoped memory for tpu_custom_call.1']
    #allocation8 [shape = 'u8[32768]{0}', space=vmem, size = 0x8000, scoped, tag = 'input window, operand 2, single buffered']
    #allocation9 [shape = 'u8[16384]{0}', space=vmem, size = 0x4000, scoped, tag = 'input window, operand 3, single buffered']
    #allocation10 [shape = 's32[1]{0}', space=sflag, size = 0x4, scoped, tag = 'scoped memory for tpu_custom_call.1']
    #allocation11 [shape = 'u8[32768]{0}', space=vmem, size = 0x8000, scoped, tag = 'input window, operand 4, single buffered']
    #allocation12 [shape = 'u8[32768]{0}', space=vmem, size = 0x8000, scoped, tag = 'input window, operand 5, single buffered']
    #allocation13 [shape = 's32[1]{0}', space=sflag, size = 0x4, scoped, tag = 'scoped memory for tpu_custom_call.1']
    #allocation14 [shape = 'u8[512]{0}', space=vmem, size = 0x400, scoped, tag = 'output window, operand 0, single buffered']
    %14 = vsyncpa [#allocation4], 0
    %15 = vsyncpa [#allocation7], 0
    %16 = vsyncpa [#allocation10], 0
    %17 = vsyncpa [#allocation13], 0
    %18 = vsyncpa [#allocation5], 0
    // Predicated region
    $region2: #{tpu_custom_call.1} parent=1 // pred_check
      _
    $region3: #{tpu_custom_call.1} parent=1 // pred_check_branch
      %20 = sbr.rel (0) target = $region5
    $region4: #{tpu_custom_call.1} parent=1 // pred_region
      %s22 = ssub.s32 128, 128
      %23 = vsyncadd [#allocation4], %s22
      %s25 = sshll.u32 [#allocation3], 4
      %s26 = int_to_ptr.vmem [resolvable:$true] %s25
      %28 = dma.hbm_to_vmem [thread:$0]  %s0, 128, %s26, [#allocation4]
    $region5: #{tpu_custom_call.1} parent=1 // pred_fallthru
      _
    // Predicated region
    $region6: #{tpu_custom_call.1} parent=1 // pred_check
      _
    $region7: #{tpu_custom_call.1} parent=1 // pred_check_branch
      %30 = sbr.rel (0) target = $region9
    $region8: #{tpu_custom_call.1} parent=1 // pred_region
      %s32 = ssub.s32 512, 512
      %33 = vsyncadd [#allocation7], %s32
      %s34 = sshll.u32 [#allocation6], 4
      %s35 = int_to_ptr.vmem [resolvable:$true] %s34
      %40 = dma.hbm_to_vmem [thread:$0]  %s1, 512, %s35, [#allocation7], 64, 64, 4
    $region9: #{tpu_custom_call.1} parent=1 // pred_fallthru
      _
    // Predicated region
    $region10: #{tpu_custom_call.1} parent=1 // pred_check
      _
    $region11: #{tpu_custom_call.1} parent=1 // pred_check_branch
      %42 = sbr.rel (0) target = $region13
    $region12: #{tpu_custom_call.1} parent=1 // pred_region
      %s44 = ssub.s32 1024, 1024
      %45 = vsyncadd [#allocation7], %s44
      %s46 = sshll.u32 [#allocation8], 4
      %s47 = int_to_ptr.vmem [resolvable:$true] %s46
      %52 = dma.hbm_to_vmem [thread:$0]  %s2, 1024, %s47, [#allocation7], 128, 128, 8
    $region13: #{tpu_custom_call.1} parent=1 // pred_fallthru
      _
    // Predicated region
    $region14: #{tpu_custom_call.1} parent=1 // pred_check
      _
    $region15: #{tpu_custom_call.1} parent=1 // pred_check_branch
      %54 = sbr.rel (0) target = $region17
    $region16: #{tpu_custom_call.1} parent=1 // pred_region
      %s56 = ssub.s32 512, 512
      %57 = vsyncadd [#allocation10], %s56
      %s58 = sshll.u32 [#allocation9], 4
      %s59 = int_to_ptr.vmem [resolvable:$true] %s58
      %64 = dma.hbm_to_vmem [thread:$0]  %s3, 512, %s59, [#allocation10], 64, 64, 4
    $region17: #{tpu_custom_call.1} parent=1 // pred_fallthru
      _
    // Predicated region
    $region18: #{tpu_custom_call.1} parent=1 // pred_check
      _
    $region19: #{tpu_custom_call.1} parent=1 // pred_check_branch
      %66 = sbr.rel (0) target = $region21
    $region20: #{tpu_custom_call.1} parent=1 // pred_region
      %s68 = ssub.s32 1024, 1024
      %69 = vsyncadd [#allocation10], %s68
      %s70 = sshll.u32 [#allocation11], 4
      %s71 = int_to_ptr.vmem [resolvable:$true] %s70
      %76 = dma.hbm_to_vmem [thread:$0]  %s4, 1024, %s71, [#allocation10], 128, 128, 8
    $region21: #{tpu_custom_call.1} parent=1 // pred_fallthru
      _
    // Predicated region
    $region22: #{tpu_custom_call.1} parent=1 // pred_check
      _
    $region23: #{tpu_custom_call.1} parent=1 // pred_check_branch
      %78 = sbr.rel (0) target = $region25
    $region24: #{tpu_custom_call.1} parent=1 // pred_region
      %s80 = ssub.s32 1024, 1024
      %81 = vsyncadd [#allocation13], %s80
      %s82 = sshll.u32 [#allocation12], 4
      %s83 = int_to_ptr.vmem [resolvable:$true] %s82
      %88 = dma.hbm_to_vmem [thread:$0]  %s5, 1024, %s83, [#allocation13], 128, 128, 8
    $region25: #{tpu_custom_call.1} parent=1 // pred_fallthru
      _
    // Predicated region
    $region26: #{tpu_custom_call.1} parent=1 // pred_check
      _
    $region27: #{tpu_custom_call.1} parent=1 // pred_check_branch
      %90 = sbr.rel (0) target = $region29
    $region28: #{tpu_custom_call.1} parent=1 // pred_region
      _
    $region29: #{tpu_custom_call.1} parent=1 // pred_fallthru
      _
    // Predicated region
    $region30: #{tpu_custom_call.1} parent=1 // pred_check
      _
    $region31: #{tpu_custom_call.1} parent=1 // pred_check_branch
      %92 = sbr.rel (0) target = $region33
    $region32: #{tpu_custom_call.1} parent=1 // pred_region
      %93 = dma.done [#allocation4], 128
    $region33: #{tpu_custom_call.1} parent=1 // pred_fallthru
      _
    // Predicated region
    $region34: #{tpu_custom_call.1} parent=1 // pred_check
      _
    $region35: #{tpu_custom_call.1} parent=1 // pred_check_branch
      %95 = sbr.rel (0) target = $region37
    $region36: #{tpu_custom_call.1} parent=1 // pred_region
      %96 = dma.done [#allocation7], 512
    $region37: #{tpu_custom_call.1} parent=1 // pred_fallthru
      _
    // Predicated region
    $region38: #{tpu_custom_call.1} parent=1 // pred_check
      _
    $region39: #{tpu_custom_call.1} parent=1 // pred_check_branch
      %98 = sbr.rel (0) target = $region41
    $region40: #{tpu_custom_call.1} parent=1 // pred_region
      %99 = dma.done [#allocation7], 1024
    $region41: #{tpu_custom_call.1} parent=1 // pred_fallthru
      _
    // Predicated region
    $region42: #{tpu_custom_call.1} parent=1 // pred_check
      _
    $region43: #{tpu_custom_call.1} parent=1 // pred_check_branch
      %101 = sbr.rel (0) target = $region45
    $region44: #{tpu_custom_call.1} parent=1 // pred_region
      %102 = dma.done [#allocation10], 512
    $region45: #{tpu_custom_call.1} parent=1 // pred_fallthru
      _
    // Predicated region
    $region46: #{tpu_custom_call.1} parent=1 // pred_check
      _
    $region47: #{tpu_custom_call.1} parent=1 // pred_check_branch
      %104 = sbr.rel (0) target = $region49
    $region48: #{tpu_custom_call.1} parent=1 // pred_region
      %105 = dma.done [#allocation10], 1024
    $region49: #{tpu_custom_call.1} parent=1 // pred_fallthru
      _
    // Predicated region
    $region50: #{tpu_custom_call.1} parent=1 // pred_check
      _
    $region51: #{tpu_custom_call.1} parent=1 // pred_check_branch
      %107 = sbr.rel (0) target = $region53
    $region52: #{tpu_custom_call.1} parent=1 // pred_region
      %108 = dma.done [#allocation13], 1024
    $region53: #{tpu_custom_call.1} parent=1 // pred_fallthru
      _
    %v110 = vld [vmem:[#allocation3] sm:$0xff]
    %v111 = vpack.c.bf16 %v110, %v110
    %v112 = vld [vmem:[#allocation6] sm:$0xf]
    %v113 = vld [vmem:[#allocation6 + $0x4] sm:$0xf]
    %v114 = vld [vmem:[#allocation6 + $0x8] sm:$0xf]
    %v115 = vld [vmem:[#allocation6 + $0xc] sm:$0xf]
    %v116 = vld [vmem:[#allocation6 + $0x10] sm:$0xf]
    %v117 = vld [vmem:[#allocation6 + $0x14] sm:$0xf]
    %v118 = vld [vmem:[#allocation6 + $0x18] sm:$0xf]
    %v119 = vld [vmem:[#allocation6 + $0x1c] sm:$0xf]
    %v120 = vld [vmem:[#allocation8] sm:$0xff]
    %v121 = vld [vmem:[#allocation8 + $0x8] sm:$0xff]
    %v122 = vld [vmem:[#allocation8 + $0x10] sm:$0xff]
    %v123 = vld [vmem:[#allocation8 + $0x18] sm:$0xff]
    %v124 = vld [vmem:[#allocation8 + $0x20] sm:$0xff]
    %v125 = vld [vmem:[#allocation8 + $0x28] sm:$0xff]
    %v126 = vld [vmem:[#allocation8 + $0x30] sm:$0xff]
    %v127 = vld [vmem:[#allocation8 + $0x38] sm:$0xff]
    %129 = vset.pattern.permute.xlu0 0
    %130 = vperm.xlu0 %129, %v120
    %v131 = vpop.permute.xlu0 %130
    %134 = vset.pattern.permute.xlu0 0
    %135 = vperm.xlu0 %134, %v121
    %v136 = vpop.permute.xlu0 %135
    %139 = vset.pattern.permute.xlu0 0
    %140 = vperm.xlu0 %139, %v122
    %v141 = vpop.permute.xlu0 %140
    %144 = vset.pattern.permute.xlu0 0
    %145 = vperm.xlu0 %144, %v123
    %v146 = vpop.permute.xlu0 %145
    %149 = vset.pattern.permute.xlu0 0
    %150 = vperm.xlu0 %149, %v124
    %v151 = vpop.permute.xlu0 %150
    %154 = vset.pattern.permute.xlu0 0
    %155 = vperm.xlu0 %154, %v125
    %v156 = vpop.permute.xlu0 %155
    %159 = vset.pattern.permute.xlu0 0
    %160 = vperm.xlu0 %159, %v126
    %v161 = vpop.permute.xlu0 %160
    %164 = vset.pattern.permute.xlu0 0
    %165 = vperm.xlu0 %164, %v127
    %v166 = vpop.permute.xlu0 %165
    %v176 = vunpack.c.l.b16 %v112
    %v177 = vunpack.c.l.b16 %v113
    %v178 = vunpack.c.l.b16 %v114
    %v179 = vunpack.c.l.b16 %v115
    %v180 = vunpack.c.l.b16 %v116
    %v181 = vunpack.c.l.b16 %v117
    %v182 = vunpack.c.l.b16 %v118
    %v183 = vunpack.c.l.b16 %v119
    %v184 = vpack.c.b16 %v177, %v176
    %v185 = vpack.c.b16 %v179, %v178
    %v186 = vpack.c.b16 %v181, %v180
    %v187 = vpack.c.b16 %v183, %v182
    %vm188 = vcmask 261120
    %v190 = vsel %vm188, %v184, 0
    %v193 = vsel %vm188, %v185, 0
    %v196 = vsel %vm188, %v186, 0
    %v199 = vsel %vm188, %v187, 0
    %v202 = vsel %vm188, %v111, 0
    %204 = vmatprep.subr.bf16.mxu0 0
    %205 = vmatpush1.bf16.xpose.msra.mxu0 %v202
    %206 = vmatprep.subr.bf16.mxu0 0
    %207 = vmatpush1.bf16.xpose.msra.mxu0 0
    %208 = vmatprep.subr.bf16.mxu0 0
    %209 = vmatpush1.bf16.xpose.msra.mxu0 0
    %210 = vmatprep.subr.bf16.mxu0 0
    %211 = vmatpush1.bf16.xpose.msra.mxu0 0
    %212 = vmatprep.subr.bf16.mxu0 0
    %213 = vmatpush1.bf16.xpose.msra.mxu0 0
    %214 = vmatprep.subr.bf16.mxu0 0
    %215 = vmatpush1.bf16.xpose.msra.mxu0 0
    %216 = vmatprep.subr.bf16.mxu0 0
    %217 = vmatpush1.bf16.xpose.msra.mxu0 0
    %218 = vmatprep.subr.bf16.mxu0 0
    %219 = vmatpush1.bf16.xpose.msra.mxu0 0
    %220 = vmatprep.subr.bf16.mxu0 0
    %221 = vmatpush1.bf16.xpose.msra.mxu0 0
    %222 = vmatprep.subr.bf16.mxu0 0
    %223 = vmatpush1.bf16.xpose.msra.mxu0 0
    %224 = vmatprep.subr.bf16.mxu0 0
    %225 = vmatpush1.bf16.xpose.msra.mxu0 0
    %226 = vmatprep.subr.bf16.mxu0 0
    %227 = vmatpush1.bf16.xpose.msra.mxu0 0
    %228 = vmatprep.subr.bf16.mxu0 0
    %229 = vmatpush1.bf16.xpose.msra.mxu0 0
    %230 = vmatprep.subr.bf16.mxu0 0
    %231 = vmatpush1.bf16.xpose.msra.mxu0 0
    %232 = vmatprep.subr.bf16.mxu0 0
    %233 = vmatpush1.bf16.xpose.msra.mxu0 0
    %234 = vmatprep.subr.bf16.mxu0 0
    %235 = vmatpush1.bf16.xpose.msra.mxu0 0
    %236 = vmatprep.mubr.bf16.mxu0 0
    %237 = vmatmul.mubr.bf16.gmra.mrb[0].mxu0 %v190
    %v238 = vpop.f32.mrb[0].mxu0
    %v239 = vadd.f32 %v131, %v238
    %v240 = vpop.f32.mrb[0].mxu0
    %v241 = vpop.f32.mrb[0].mxu0
    %v242 = vadd.f32 %v136, %v241
    %v243 = vpop.f32.mrb[0].mxu0
    %244 = vmatprep.mubr.bf16.mxu0 0
    %245 = vmatmul.mubr.bf16.gmra.mrb[0].mxu0 %v193
    %v246 = vpop.f32.mrb[0].mxu0
    %v247 = vadd.f32 %v141, %v246
    %v248 = vpop.f32.mrb[0].mxu0
    %v249 = vpop.f32.mrb[0].mxu0
    %v250 = vadd.f32 %v146, %v249
    %v251 = vpop.f32.mrb[0].mxu0
    %252 = vmatprep.mubr.bf16.mxu0 0
    %253 = vmatmul.mubr.bf16.gmra.mrb[0].mxu0 %v196
    %v254 = vpop.f32.mrb[0].mxu0
    %v255 = vadd.f32 %v151, %v254
    %v256 = vpop.f32.mrb[0].mxu0
    %v257 = vpop.f32.mrb[0].mxu0
    %v258 = vadd.f32 %v156, %v257
    %v259 = vpop.f32.mrb[0].mxu0
    %260 = vmatprep.mubr.bf16.mxu0 0
    %261 = vmatmul.mubr.bf16.gmra.mrb[0].mxu0 %v199
    %v262 = vpop.f32.mrb[0].mxu0
    %v263 = vadd.f32 %v161, %v262
    %v264 = vpop.f32.mrb[0].mxu0
    %v265 = vpop.f32.mrb[0].mxu0
    %v266 = vadd.f32 %v166, %v265
    %v267 = vpop.f32.mrb[0].mxu0
    %268 = vdwg.mxu0
    %v269 = vmax.f32 %v239, 0.0
    %v270 = vmax.f32 %v242, 0.0
    %v271 = vmax.f32 %v247, 0.0
    %v272 = vmax.f32 %v250, 0.0
    %v273 = vmax.f32 %v255, 0.0
    %v274 = vmax.f32 %v258, 0.0
    %v275 = vmax.f32 %v263, 0.0
    %v276 = vmax.f32 %v266, 0.0
    %v277 = vpack.c.bf16 %v270, %v269
    %v278 = vpack.c.bf16 %v272, %v271
    %v279 = vpack.c.bf16 %v274, %v273
    %v280 = vpack.c.bf16 %v276, %v275
    %v281 = vld [vmem:[#allocation9] sm:$0xf]
    %v282 = vld [vmem:[#allocation9 + $0x4] sm:$0xf]
    %v283 = vld [vmem:[#allocation9 + $0x8] sm:$0xf]
    %v284 = vld [vmem:[#allocation9 + $0xc] sm:$0xf]
    %v285 = vld [vmem:[#allocation9 + $0x10] sm:$0xf]
    %v286 = vld [vmem:[#allocation9 + $0x14] sm:$0xf]
    %v287 = vld [vmem:[#allocation9 + $0x18] sm:$0xf]
    %v288 = vld [vmem:[#allocation9 + $0x1c] sm:$0xf]
    %v289 = vld [vmem:[#allocation11] sm:$0xff]
    %v290 = vld [vmem:[#allocation11 + $0x8] sm:$0xff]
    %v291 = vld [vmem:[#allocation11 + $0x10] sm:$0xff]
    %v292 = vld [vmem:[#allocation11 + $0x18] sm:$0xff]
    %v293 = vld [vmem:[#allocation11 + $0x20] sm:$0xff]
    %v294 = vld [vmem:[#allocation11 + $0x28] sm:$0xff]
    %v295 = vld [vmem:[#allocation11 + $0x30] sm:$0xff]
    %v296 = vld [vmem:[#allocation11 + $0x38] sm:$0xff]
    %298 = vset.pattern.permute.xlu0 0
    %299 = vperm.xlu0 %298, %v289
    %v300 = vpop.permute.xlu0 %299
    %303 = vset.pattern.permute.xlu0 0
    %304 = vperm.xlu0 %303, %v290
    %v305 = vpop.permute.xlu0 %304
    %308 = vset.pattern.permute.xlu0 0
    %309 = vperm.xlu0 %308, %v291
    %v310 = vpop.permute.xlu0 %309
    %313 = vset.pattern.permute.xlu0 0
    %314 = vperm.xlu0 %313, %v292
    %v315 = vpop.permute.xlu0 %314
    %318 = vset.pattern.permute.xlu0 0
    %319 = vperm.xlu0 %318, %v293
    %v320 = vpop.permute.xlu0 %319
    %323 = vset.pattern.permute.xlu0 0
    %324 = vperm.xlu0 %323, %v294
    %v325 = vpop.permute.xlu0 %324
    %328 = vset.pattern.permute.xlu0 0
    %329 = vperm.xlu0 %328, %v295
    %v330 = vpop.permute.xlu0 %329
    %333 = vset.pattern.permute.xlu0 0
    %334 = vperm.xlu0 %333, %v296
    %v335 = vpop.permute.xlu0 %334
    %v345 = vunpack.c.l.b16 %v281
    %v346 = vunpack.c.l.b16 %v282
    %v347 = vunpack.c.l.b16 %v283
    %v348 = vunpack.c.l.b16 %v284
    %v349 = vunpack.c.l.b16 %v285
    %v350 = vunpack.c.l.b16 %v286
    %v351 = vunpack.c.l.b16 %v287
    %v352 = vunpack.c.l.b16 %v288
    %v353 = vpack.c.b16 %v346, %v345
    %v354 = vpack.c.b16 %v348, %v347
    %v355 = vpack.c.b16 %v350, %v349
    %v356 = vpack.c.b16 %v352, %v351
    %vm357 = vcmask 523264
    %v359 = vsel %vm357, %v353, 0
    %v362 = vsel %vm357, %v354, 0
    %v365 = vsel %vm357, %v355, 0
    %v368 = vsel %vm357, %v356, 0
    %370 = vmatprep.subr.bf16.mxu0 0
    %371 = vmatpush1.bf16.msra.mxu0 %v277
    %372 = vmatprep.subr.bf16.mxu0 0
    %373 = vmatpush1.bf16.msra.mxu0 %v278
    %374 = vmatprep.subr.bf16.mxu0 0
    %375 = vmatpush1.bf16.msra.mxu0 %v279
    %376 = vmatprep.subr.bf16.mxu0 0
    %377 = vmatpush1.bf16.msra.mxu0 %v280
    %378 = vmatprep.subr.bf16.mxu0 0
    %379 = vmatpush1.bf16.msra.mxu0 0
    %380 = vmatprep.subr.bf16.mxu0 0
    %381 = vmatpush1.bf16.msra.mxu0 0
    %382 = vmatprep.subr.bf16.mxu0 0
    %383 = vmatpush1.bf16.msra.mxu0 0
    %384 = vmatprep.subr.bf16.mxu0 0
    %385 = vmatpush1.bf16.msra.mxu0 0
    %386 = vmatprep.subr.bf16.mxu0 0
    %387 = vmatpush1.bf16.msra.mxu0 0
    %388 = vmatprep.subr.bf16.mxu0 0
    %389 = vmatpush1.bf16.msra.mxu0 0
    %390 = vmatprep.subr.bf16.mxu0 0
    %391 = vmatpush1.bf16.msra.mxu0 0
    %392 = vmatprep.subr.bf16.mxu0 0
    %393 = vmatpush1.bf16.msra.mxu0 0
    %394 = vmatprep.subr.bf16.mxu0 0
    %395 = vmatpush1.bf16.msra.mxu0 0
    %396 = vmatprep.subr.bf16.mxu0 0
    %397 = vmatpush1.bf16.msra.mxu0 0
    %398 = vmatprep.subr.bf16.mxu0 0
    %399 = vmatpush1.bf16.msra.mxu0 0
    %400 = vmatprep.subr.bf16.mxu0 0
    %401 = vmatpush1.bf16.msra.mxu0 0
    %402 = vmatprep.mubr.bf16.mxu0 0
    %403 = vmatmul.mubr.bf16.gmra.mrb[0].mxu0 %v359
    %v404 = vpop.f32.mrb[0].mxu0
    %v405 = vadd.f32 %v300, %v404
    %v406 = vpop.f32.mrb[0].mxu0
    %v407 = vpop.f32.mrb[0].mxu0
    %v408 = vadd.f32 %v305, %v407
    %v409 = vpop.f32.mrb[0].mxu0
    %410 = vmatprep.mubr.bf16.mxu0 0
    %411 = vmatmul.mubr.bf16.gmra.mrb[0].mxu0 %v362
    %v412 = vpop.f32.mrb[0].mxu0
    %v413 = vadd.f32 %v310, %v412
    %v414 = vpop.f32.mrb[0].mxu0
    %v415 = vpop.f32.mrb[0].mxu0
    %v416 = vadd.f32 %v315, %v415
    %v417 = vpop.f32.mrb[0].mxu0
    %418 = vmatprep.mubr.bf16.mxu0 0
    %419 = vmatmul.mubr.bf16.gmra.mrb[0].mxu0 %v365
    %v420 = vpop.f32.mrb[0].mxu0
    %v421 = vadd.f32 %v320, %v420
    %v422 = vpop.f32.mrb[0].mxu0
    %v423 = vpop.f32.mrb[0].mxu0
    %v424 = vadd.f32 %v325, %v423
    %v425 = vpop.f32.mrb[0].mxu0
    %426 = vmatprep.mubr.bf16.mxu0 0
    %427 = vmatmul.mubr.bf16.gmra.mrb[0].mxu0 %v368
    %v428 = vpop.f32.mrb[0].mxu0
    %v429 = vadd.f32 %v330, %v428
    %v430 = vpop.f32.mrb[0].mxu0
    %v431 = vpop.f32.mrb[0].mxu0
    %v432 = vadd.f32 %v335, %v431
    %v433 = vpop.f32.mrb[0].mxu0
    %434 = vdwg.mxu0
    %v435 = vmax.f32 %v405, 0.0
    %v436 = vmax.f32 %v408, 0.0
    %v437 = vmax.f32 %v413, 0.0
    %v438 = vmax.f32 %v416, 0.0
    %v439 = vmax.f32 %v421, 0.0
    %v440 = vmax.f32 %v424, 0.0
    %v441 = vmax.f32 %v429, 0.0
    %v442 = vmax.f32 %v432, 0.0
    %v443 = vld [vmem:[#allocation12] sm:$0xff]
    %v444 = vld [vmem:[#allocation12 + $0x8] sm:$0xff]
    %v445 = vld [vmem:[#allocation12 + $0x10] sm:$0xff]
    %v446 = vld [vmem:[#allocation12 + $0x18] sm:$0xff]
    %v447 = vld [vmem:[#allocation12 + $0x20] sm:$0xff]
    %v448 = vld [vmem:[#allocation12 + $0x28] sm:$0xff]
    %v449 = vld [vmem:[#allocation12 + $0x30] sm:$0xff]
    %v450 = vld [vmem:[#allocation12 + $0x38] sm:$0xff]
    %452 = vset.pattern.permute.xlu0 0
    %453 = vperm.xlu0 %452, %v443
    %v454 = vpop.permute.xlu0 %453
    %457 = vset.pattern.permute.xlu0 0
    %458 = vperm.xlu0 %457, %v444
    %v459 = vpop.permute.xlu0 %458
    %462 = vset.pattern.permute.xlu0 0
    %463 = vperm.xlu0 %462, %v445
    %v464 = vpop.permute.xlu0 %463
    %467 = vset.pattern.permute.xlu0 0
    %468 = vperm.xlu0 %467, %v446
    %v469 = vpop.permute.xlu0 %468
    %472 = vset.pattern.permute.xlu0 0
    %473 = vperm.xlu0 %472, %v447
    %v474 = vpop.permute.xlu0 %473
    %477 = vset.pattern.permute.xlu0 0
    %478 = vperm.xlu0 %477, %v448
    %v479 = vpop.permute.xlu0 %478
    %482 = vset.pattern.permute.xlu0 0
    %483 = vperm.xlu0 %482, %v449
    %v484 = vpop.permute.xlu0 %483
    %487 = vset.pattern.permute.xlu0 0
    %488 = vperm.xlu0 %487, %v450
    %v489 = vpop.permute.xlu0 %488
    %v491 = vmul.f32 %v435, %v454
    %v492 = vmul.f32 %v436, %v459
    %v493 = vmul.f32 %v437, %v464
    %v494 = vmul.f32 %v438, %v469
    %v495 = vmul.f32 %v439, %v474
    %v496 = vmul.f32 %v440, %v479
    %v497 = vmul.f32 %v441, %v484
    %v498 = vmul.f32 %v442, %v489
    %vm499 = vcmask 64512
    %v500 = vsel %vm499, %v491, 0.0
    %v501 = vsel %vm499, %v492, 0.0
    %v502 = vadd.f32 %v500, %v501
    %v503 = vsel %vm499, %v493, 0.0
    %v504 = vadd.f32 %v502, %v503
    %v505 = vsel %vm499, %v494, 0.0
    %v506 = vadd.f32 %v504, %v505
    %v507 = vsel %vm499, %v495, 0.0
    %v508 = vadd.f32 %v506, %v507
    %v509 = vsel %vm499, %v496, 0.0
    %v510 = vadd.f32 %v508, %v509
    %v511 = vsel %vm499, %v497, 0.0
    %v512 = vadd.f32 %v510, %v511
    %v513 = vsel %vm499, %v498, 0.0
    %v514 = vadd.f32 %v512, %v513
    %v515 = vrot.slane %v514, 4
    %v516 = vadd.f32 %v514, %v515
    %v517 = vrot.slane %v516, 2
    %v518 = vadd.f32 %v516, %v517
    %v519 = vrot.slane %v518, 1
    %v520 = vadd.f32 %v518, %v519
    %v521 = vld [vmem:[#allocation2] sm:$0x1]
    %523 = vset.pattern.permute.xlu0 0
    %524 = vperm.xlu0 %523, %v521
    %v525 = vpop.permute.xlu0 %524
    %v527 = vlaneseq
    %v528 = vshrl.u32 %v527, 7
    %v529 = vsub.s32 0, %v528
    %v530 = vrot.slane %v525, %v529
    %v531 = vadd.f32 %v520, %v530
    %vm532 = vcmp.ne.f32.partialorder %v531, %v531
    %v533 = vsel %vm532, 0.0, %v531
    %vm534 = vcmp.eq.f32.partialorder %v533, inf
    %v535 = vsel %vm534, 3.4028235e+38, %v533
    %vm536 = vcmp.eq.f32.partialorder %v535, -inf
    %v537 = vsel %vm536, -3.4028235e+38, %v535
    %vm538 = vcmask 57344
    %539 = vst.msk [vmem:[#allocation14] sm:$0x1] %vm538, %v537
    // Predicated region
    $region54: #{tpu_custom_call.1} parent=1 // pred_check
      _
    $region55: #{tpu_custom_call.1} parent=1 // pred_check_branch
      %541 = sbr.rel (0) target = $region57
    $region56: #{tpu_custom_call.1} parent=1 // pred_region
      %s543 = ssub.s32 16, 16
      %544 = vsyncadd [#allocation5], %s543
      %s546 = sshll.u32 [#allocation14], 4
      %s547 = int_to_ptr.vmem [resolvable:$true] %s546
      %549 = dma.vmem_to_hbm [thread:$0]  %s547, 16, %s7, [#allocation5]
    $region57: #{tpu_custom_call.1} parent=1 // pred_fallthru
      _
    // Predicated region
    $region58: #{tpu_custom_call.1} parent=1 // pred_check
      _
    $region59: #{tpu_custom_call.1} parent=1 // pred_check_branch
      %551 = sbr.rel (0) target = $region61
    $region60: #{tpu_custom_call.1} parent=1 // pred_region
      %552 = dma.done [#allocation5], 16
    $region61: #{tpu_custom_call.1} parent=1 // pred_fallthru
      _
    %553 = vsyncpa [#allocation4], 1
    %554 = vsyncpa [#allocation7], 1
    %555 = vsyncpa [#allocation10], 1
    %556 = vsyncpa [#allocation13], 1
    %557 = vsyncpa [#allocation5], 1

</llo_original>
